<compile_context>
chip_gen: v5e
topology: v5e:2x2
jax: 0.10.0
libtpu: 0.0.40
codegen_flags: <defaults>
</compile_context>

<pallas_src>
import jax
import jax.numpy as jnp
from jax.experimental import pallas as pl
from jax.experimental.pallas import tpu as pltpu

# ---------------- problem sizes (small, consistent with the module) ---------
N = 2              # batch
CIN = 4            # input image channels
H = W = 16         # spatial
CHID = 32          # backbone hidden channels
T = 8              # caption sequence length
VOCAB = 32         # tokenizer vocab size
DLANG = 32         # language hidden dim (== CHID so dot-product fusion works)
KPATCH = CIN * 9   # im2col patch width (3x3 kernel)
HW = H * W         # 256 -> lives on the lane axis everywhere


def vlrcnn_kernel(patchesT_ref, w1e_ref, toke_ref, wle_ref, wbT_ref, bbT_ref,
                  logitsT_ref, bboxT_ref, head_lhs_ref):
    # One grid step == one batch element.  All big tensors are lane-dense:
    # the HW=256 axis is the last (lane) axis.

    # --- backbone conv as im2col matmul + ReLU (bias folded into w1e) ---
    # [CHID, KPATCH+1] @ [KPATCH+1, HW] -> [CHID, HW]
    visT = jnp.maximum(
        jnp.dot(w1e_ref[...], patchesT_ref[0],
                preferred_element_type=jnp.float32), 0.0)

    # --- language model projection + ReLU (bias + 1/sqrt(CHID) folded into wle)
    # [T, DLANG+1] @ [DLANG+1, CHID] -> [T, CHID]
    lang = jnp.maximum(
        jnp.dot(toke_ref[0], wle_ref[...],
                preferred_element_type=jnp.float32), 0.0)

    # --- fused heads: stack [lang ; wb^T] and do ONE MXU matmul against visT.
    head_lhs_ref[:T, :] = lang
    head_lhs_ref[T:, :] = wbT_ref[...]
    headT = jnp.dot(head_lhs_ref[...], visT,
                    preferred_element_type=jnp.float32)          # [T+4, HW]

    # split: fusion logits (already scaled via wle) and bbox deltas (+ bias).
    logitsT_ref[0] = headT[:T]
    bboxT_ref[0] = headT[T:] + bbT_ref[...]                      # [4,1] broadcast


def vlrcnn_forward(images, token_ids, params):
    """images: [N, CIN, H, W] float32 (NCHW);  token_ids: [N, T] int32.

    Returns (logitsT [N, T, HW], bboxT [N, 4, HW]) in lane-dense layout.
    """
    w1, b1, emb, wl, bl, wb, bb = (params[k] for k in
                                   ("w1", "b1", "emb", "wl", "bl", "wb", "bb"))

    # ---- glue: im2col (3x3, stride 1, pad 1) built directly in transposed,
    # lane-dense form [N, KPATCH, HW]: row = (cin, tap) cin-major (matches
    # w1.reshape(CHID, CIN*9)), lane = spatial location.  A trailing ones row
    # folds the conv bias into the matmul.
    # TODO(synk): for real image sizes move im2col into the kernel (the 9x HBM
    # expansion here does not scale); at 2x37x256 f32 it is negligible.
    xp = jnp.pad(images, ((0, 0), (0, 0), (1, 1), (1, 1)))
    shifts = [xp[:, :, dy:dy + H, dx:dx + W]
              for dy in range(3) for dx in range(3)]
    patchesT = jnp.stack(shifts, axis=2).reshape(N, KPATCH, HW)
    patchesT = jnp.concatenate(
        [patchesT, jnp.ones((N, 1, HW), jnp.float32)], axis=1)   # [N, KPATCH+1, HW]

    # conv weight [CHID, CIN, 3, 3] (+ bias column) -> [CHID, KPATCH+1]
    w1e = jnp.concatenate([w1.reshape(CHID, KPATCH), b1[:, None]], axis=1)

    # ---- glue: token embedding lookup; ones column folds the LM bias and the
    # 1/sqrt(CHID) fusion scale is pre-folded into the LM weights.
    tok_e = jnp.concatenate(
        [emb[token_ids], jnp.ones((N, T, 1), jnp.float32)], axis=-1)  # [N,T,DLANG+1]
    scale = 1.0 / jnp.sqrt(jnp.float32(CHID))
    wle = jnp.concatenate([wl, bl[None, :]], axis=0) * scale     # [DLANG+1, CHID]

    wbT = wb.T                                                   # [4, CHID]
    bbT = bb.reshape(4, 1)                                       # [4, 1]

    grid_spec = pltpu.PrefetchScalarGridSpec(
        num_scalar_prefetch=0,
        grid=(N,),
        in_specs=[
            pl.BlockSpec((1, KPATCH + 1, HW), lambda n: (n, 0, 0)),  # patchesT
            pl.BlockSpec((CHID, KPATCH + 1), lambda n: (0, 0)),      # w1e
            pl.BlockSpec((1, T, DLANG + 1), lambda n: (n, 0, 0)),    # tok_e
            pl.BlockSpec((DLANG + 1, CHID), lambda n: (0, 0)),       # wle (scaled)
            pl.BlockSpec((4, CHID), lambda n: (0, 0)),               # wb^T
            pl.BlockSpec((4, 1), lambda n: (0, 0)),                  # bbox bias
        ],
        out_specs=[
            pl.BlockSpec((1, T, HW), lambda n: (n, 0, 0)),           # logitsT
            pl.BlockSpec((1, 4, HW), lambda n: (n, 0, 0)),           # bboxT
        ],
        scratch_shapes=[pltpu.VMEM((T + 4, CHID), jnp.float32)],     # fused head LHS
    )

    logitsT, bboxT = pl.pallas_call(
        vlrcnn_kernel,
        grid_spec=grid_spec,
        out_shape=(
            jax.ShapeDtypeStruct((N, T, HW), jnp.float32),
            jax.ShapeDtypeStruct((N, 4, HW), jnp.float32),
        ),
        compiler_params=pltpu.CompilerParams(
            dimension_semantics=("parallel",)),
    )(patchesT, w1e, tok_e, wle, wbT, bbT)
    return logitsT, bboxT


def reference_forward(images, token_ids, params):
    """Plain-JAX reference (same transposed output layout)."""
    w1, b1, emb, wl, bl, wb, bb = (params[k] for k in
                                   ("w1", "b1", "emb", "wl", "bl", "wb", "bb"))
    hi = jax.lax.Precision.HIGHEST
    vis = jax.lax.conv_general_dilated(
        images, w1, window_strides=(1, 1), padding="SAME",
        dimension_numbers=("NCHW", "OIHW", "NCHW"), precision=hi)
    vis = jnp.maximum(vis + b1[None, :, None, None], 0.0)        # [N, CHID, H, W]
    visT = vis.reshape(N, CHID, HW)                              # [N, CHID, HW]
    lang = jnp.maximum(
        jnp.einsum("ntd,dc->ntc", emb[token_ids], wl, precision=hi) + bl, 0.0)
    logitsT = jnp.einsum("ntc,nch->nth", lang, visT,
                         precision=hi) / jnp.sqrt(jnp.float32(CHID))
    bboxT = jnp.einsum("nch,co->noh", visT, wb,
                       precision=hi) + bb[None, :, None]
    return logitsT, bboxT


def make_params(key):
    ks = jax.random.split(key, 7)
    s = 0.1
    return {
        "w1": s * jax.random.normal(ks[0], (CHID, CIN, 3, 3), jnp.float32),
        "b1": s * jax.random.normal(ks[1], (CHID,), jnp.float32),
        "emb": s * jax.random.normal(ks[2], (VOCAB, DLANG), jnp.float32),
        "wl": s * jax.random.normal(ks[3], (DLANG, CHID), jnp.float32),
        "bl": s * jax.random.normal(ks[4], (CHID,), jnp.float32),
        "wb": s * jax.random.normal(ks[5], (CHID, 4), jnp.float32),
        "bb": s * jax.random.normal(ks[6], (4,), jnp.float32),
    }


if __name__ == "__main__":
    key = jax.random.PRNGKey(0)
    k_img, k_tok, k_par = jax.random.split(key, 3)

    images = jax.random.normal(k_img, (N, CIN, H, W), jnp.float32)
    token_ids = jax.random.randint(k_tok, (N, T), 0, VOCAB, jnp.int32)
    params = make_params(k_par)

    logits, bbox = jax.jit(vlrcnn_forward)(images, token_ids, params)
    jax.block_until_ready((logits, bbox))

    ref_logits, ref_bbox = reference_forward(images, token_ids, params)
    assert logits.shape == (N, T, HW) and bbox.shape == (N, 4, HW)
    assert jnp.allclose(logits, ref_logits, rtol=1e-3, atol=1e-3)
    assert jnp.allclose(bbox, ref_bbox, rtol=1e-3, atol=1e-3)

    print("KERNEL_OK")
</pallas_src>

<mosaic_0001>
module attributes {stable_mosaic.version = 11 : i64} {
  func.func @vlrcnn_kernel(%arg0: i32, %arg1: memref<1x37x256xf32, #tpu.memory_space<vmem>>, %arg2: memref<32x37xf32, #tpu.memory_space<vmem>>, %arg3: memref<1x8x33xf32, #tpu.memory_space<vmem>>, %arg4: memref<33x32xf32, #tpu.memory_space<vmem>>, %arg5: memref<4x32xf32, #tpu.memory_space<vmem>>, %arg6: memref<4x1xf32, #tpu.memory_space<vmem>>, %arg7: memref<1x8x256xf32, #tpu.memory_space<vmem>>, %arg8: memref<1x4x256xf32, #tpu.memory_space<vmem>>, %arg9: memref<12x32xf32, #tpu.memory_space<vmem>>) attributes {dimension_semantics = [#tpu.dimension_semantics<parallel>], iteration_bounds = array<i64: 2>, scalar_prefetch = 0 : i64, scratch_operands = 1 : i64, tpu.core_type = #tpu.core_type<tc>, window_params = [{transform_indices = @transform_0, window_bounds = array<i64: 1, 37, 256>}, {pipeline_mode = #tpu.pipeline_mode<synchronous>, transform_indices = @transform_1, window_bounds = array<i64: 32, 37>}, {transform_indices = @transform_2, window_bounds = array<i64: 1, 8, 33>}, {pipeline_mode = #tpu.pipeline_mode<synchronous>, transform_indices = @transform_3, window_bounds = array<i64: 33, 32>}, {pipeline_mode = #tpu.pipeline_mode<synchronous>, transform_indices = @transform_4, window_bounds = array<i64: 4, 32>}, {pipeline_mode = #tpu.pipeline_mode<synchronous>, transform_indices = @transform_5, window_bounds = array<i64: 4, 1>}, {transform_indices = @transform_6, window_bounds = array<i64: 1, 8, 256>}, {transform_indices = @transform_7, window_bounds = array<i64: 1, 4, 256>}]} {
    %c0 = arith.constant 0 : index
    %c0_0 = arith.constant 0 : index
    %0 = vector.load %arg2[%c0, %c0_0] : memref<32x37xf32, #tpu.memory_space<vmem>>, vector<32x37xf32>
    %c0_1 = arith.constant 0 : index
    %c0_2 = arith.constant 0 : index
    %c0_3 = arith.constant 0 : index
    %1 = vector.load %arg1[%c0_1, %c0_2, %c0_3] : memref<1x37x256xf32, #tpu.memory_space<vmem>>, vector<1x37x256xf32>
    %2 = vector.shape_cast %1 : vector<1x37x256xf32> to vector<37x256xf32>
    %cst = arith.constant dense<0.000000e+00> : vector<32x256xf32>
    %3 = tpu.matmul %0, %2, %cst {dimension_numbers = #tpu.dot_dimension_numbers<[1], [0], [0], [1], [0, 0, 1, 1], [], []>} : vector<32x37xf32>, vector<37x256xf32>, vector<32x256xf32> -> vector<32x256xf32>
    %cst_4 = arith.constant 0.000000e+00 : f32
    %4 = vector.broadcast %cst_4 : f32 to vector<32x256xf32>
    %5 = arith.maximumf %3, %4 : vector<32x256xf32>
    %c0_5 = arith.constant 0 : index
    %c0_6 = arith.constant 0 : index
    %c0_7 = arith.constant 0 : index
    %6 = vector.load %arg3[%c0_5, %c0_6, %c0_7] : memref<1x8x33xf32, #tpu.memory_space<vmem>>, vector<1x8x33xf32>
    %7 = vector.shape_cast %6 : vector<1x8x33xf32> to vector<8x33xf32>
    %c0_8 = arith.constant 0 : index
    %c0_9 = arith.constant 0 : index
    %8 = vector.load %arg4[%c0_8, %c0_9] : memref<33x32xf32, #tpu.memory_space<vmem>>, vector<33x32xf32>
    %cst_10 = arith.constant dense<0.000000e+00> : vector<8x32xf32>
    %9 = tpu.matmul %7, %8, %cst_10 {dimension_numbers = #tpu.dot_dimension_numbers<[1], [0], [0], [1], [0, 0, 1, 1], [], []>} : vector<8x33xf32>, vector<33x32xf32>, vector<8x32xf32> -> vector<8x32xf32>
    %cst_11 = arith.constant 0.000000e+00 : f32
    %10 = vector.broadcast %cst_11 : f32 to vector<8x32xf32>
    %11 = arith.maximumf %9, %10 : vector<8x32xf32>
    %c0_12 = arith.constant 0 : index
    %c0_13 = arith.constant 0 : index
    %12 = vector.load %arg9[%c0_12, %c0_13] : memref<12x32xf32, #tpu.memory_space<vmem>>, vector<8x32xf32>
    tpu.vector_store %arg9[%c0_12, %c0_13], %11 {strides = array<i32>} : memref<12x32xf32, #tpu.memory_space<vmem>>, vector<8x32xf32>,
    %c0_14 = arith.constant 0 : index
    %c0_15 = arith.constant 0 : index
    %13 = vector.load %arg5[%c0_14, %c0_15] : memref<4x32xf32, #tpu.memory_space<vmem>>, vector<4x32xf32>
    %c8 = arith.constant 8 : index
    %c0_16 = arith.constant 0 : index
    %14 = vector.load %arg9[%c8, %c0_16] : memref<12x32xf32, #tpu.memory_space<vmem>>, vector<4x32xf32>
    tpu.vector_store %arg9[%c8, %c0_16], %13 {strides = array<i32>} : memref<12x32xf32, #tpu.memory_space<vmem>>, vector<4x32xf32>,
    %c0_17 = arith.constant 0 : index
    %c0_18 = arith.constant 0 : index
    %15 = vector.load %arg9[%c0_17, %c0_18] : memref<12x32xf32, #tpu.memory_space<vmem>>, vector<12x32xf32>
    %cst_19 = arith.constant dense<0.000000e+00> : vector<12x256xf32>
    %16 = tpu.matmul %15, %5, %cst_19 {dimension_numbers = #tpu.dot_dimension_numbers<[1], [0], [0], [1], [0, 0, 1, 1], [], []>} : vector<12x32xf32>, vector<32x256xf32>, vector<12x256xf32> -> vector<12x256xf32>
    %17 = vector.extract_strided_slice %16 {offsets = [0, 0], sizes = [8, 256], strides = [1, 1]} : vector<12x256xf32> to vector<8x256xf32>
    %c0_20 = arith.constant 0 : index
    %c0_21 = arith.constant 0 : index
    %c0_22 = arith.constant 0 : index
    %18 = vector.load %arg7[%c0_20, %c0_21, %c0_22] : memref<1x8x256xf32, #tpu.memory_space<vmem>>, vector<1x8x256xf32>
    %19 = vector.shape_cast %18 : vector<1x8x256xf32> to vector<8x256xf32>
    %20 = vector.shape_cast %17 : vector<8x256xf32> to vector<1x8x256xf32>
    tpu.vector_store %arg7[%c0_20, %c0_21, %c0_22], %20 {strides = array<i32>} : memref<1x8x256xf32, #tpu.memory_space<vmem>>, vector<1x8x256xf32>,
    %21 = vector.extract_strided_slice %16 {offsets = [8, 0], sizes = [4, 256], strides = [1, 1]} : vector<12x256xf32> to vector<4x256xf32>
    %c0_23 = arith.constant 0 : index
    %c0_24 = arith.constant 0 : index
    %22 = vector.load %arg6[%c0_23, %c0_24] : memref<4x1xf32, #tpu.memory_space<vmem>>, vector<4x1xf32>
    %23 = vector.broadcast %22 : vector<4x1xf32> to vector<4x256xf32>
    %24 = arith.addf %21, %23 : vector<4x256xf32>
    %c0_25 = arith.constant 0 : index
    %c0_26 = arith.constant 0 : index
    %c0_27 = arith.constant 0 : index
    %25 = vector.load %arg8[%c0_25, %c0_26, %c0_27] : memref<1x4x256xf32, #tpu.memory_space<vmem>>, vector<1x4x256xf32>
    %26 = vector.shape_cast %25 : vector<1x4x256xf32> to vector<4x256xf32>
    %27 = vector.shape_cast %24 : vector<4x256xf32> to vector<1x4x256xf32>
    tpu.vector_store %arg8[%c0_25, %c0_26, %c0_27], %27 {strides = array<i32>} : memref<1x4x256xf32, #tpu.memory_space<vmem>>, vector<1x4x256xf32>,
    return
  }
  func.func @transform_0(%arg0: i32) -> (i32, i32, i32) {
    %c0_i32 = arith.constant 0 : i32
    %c0_i32_0 = arith.constant 0 : i32
    %c0_i32_1 = arith.constant 0 : i32
    return %arg0, %c0_i32, %c0_i32_0 : i32, i32, i32
  }
  func.func @transform_1(%arg0: i32) -> (i32, i32) {
    %c0_i32 = arith.constant 0 : i32
    %c0_i32_0 = arith.constant 0 : i32
    %c0_i32_1 = arith.constant 0 : i32
    return %c0_i32, %c0_i32_0 : i32, i32
  }
  func.func @transform_2(%arg0: i32) -> (i32, i32, i32) {
    %c0_i32 = arith.constant 0 : i32
    %c0_i32_0 = arith.constant 0 : i32
    %c0_i32_1 = arith.constant 0 : i32
    return %arg0, %c0_i32, %c0_i32_0 : i32, i32, i32
  }
  func.func @transform_3(%arg0: i32) -> (i32, i32) {
    %c0_i32 = arith.constant 0 : i32
    %c0_i32_0 = arith.constant 0 : i32
    %c0_i32_1 = arith.constant 0 : i32
    return %c0_i32, %c0_i32_0 : i32, i32
  }
  func.func @transform_4(%arg0: i32) -> (i32, i32) {
    %c0_i32 = arith.constant 0 : i32
    %c0_i32_0 = arith.constant 0 : i32
    %c0_i32_1 = arith.constant 0 : i32
    return %c0_i32, %c0_i32_0 : i32, i32
  }
  func.func @transform_5(%arg0: i32) -> (i32, i32) {
    %c0_i32 = arith.constant 0 : i32
    %c0_i32_0 = arith.constant 0 : i32
    %c0_i32_1 = arith.constant 0 : i32
    return %c0_i32, %c0_i32_0 : i32, i32
  }
  func.func @transform_6(%arg0: i32) -> (i32, i32, i32) {
    %c0_i32 = arith.constant 0 : i32
    %c0_i32_0 = arith.constant 0 : i32
    %c0_i32_1 = arith.constant 0 : i32
    return %arg0, %c0_i32, %c0_i32_0 : i32, i32, i32
  }
  func.func @transform_7(%arg0: i32) -> (i32, i32, i32) {
    %c0_i32 = arith.constant 0 : i32
    %c0_i32_0 = arith.constant 0 : i32
    %c0_i32_1 = arith.constant 0 : i32
    return %arg0, %c0_i32, %c0_i32_0 : i32, i32, i32
  }
}

</mosaic_0001>

<llo_original>
// kernel: vlrcnn_forward.1
$region0: #{vlrcnn_forward.1}
  #allocation0 [shape = 'u32[]', space=smem, size = 0x4, offset = 0x4, fixed_abs, tag = 'smem constant byte address 0x4 - core index']
  #allocation1 [shape = 'u32[72,128]{1,0:T(1,128)}', space=vmem, size = 0x9000, scoped, tag = 'internal scratch']
  #allocation2 [shape = 'f32[12,32]{1,0:T(8,128)}', space=vmem, size = 0x2000, scoped, tag = 'scratch operand']
  %s0 = inlined_call_operand.vmem [shape: f32[2,37,256], index: 0, kind: input, shape index: {}]
  %s1 = inlined_call_operand.vmem [shape: f32[32,37], index: 1, kind: input, shape index: {}]
  %s2 = inlined_call_operand.vmem [shape: f32[2,8,33], index: 2, kind: input, shape index: {}]
  %s3 = inlined_call_operand.vmem [shape: f32[33,32], index: 3, kind: input, shape index: {}]
  %s4 = inlined_call_operand.vmem [shape: f32[4,32], index: 4, kind: input, shape index: {}]
  %s5 = inlined_call_operand.vmem [shape: f32[4,1], index: 5, kind: input, shape index: {}]
  %s6 = inlined_call_operand.hbm [shape: f32[2,8,256], index: 6, kind: output, shape index: {0}]
  %s7 = inlined_call_operand.hbm [shape: f32[2,4,256], index: 7, kind: output, shape index: {1}]
  %8 = xla_tuple %s6, %s7
  %s9 = sld [smem:[#allocation0]]
  $region65: #{vlrcnn_forward.1} parent=0
    _
  %s11 = ssub.s32 1, %s9
  %s12 = scalar_select 0, %s11, %s9
  $region1: #{vlrcnn_forward.1} parent=0
    #allocation3 [shape = 'u8[16384]{0}', space=vmem, size = 0x4000, scoped, tag = 'output window, operand 0']
    #allocation4 [shape = 's32[2]{0}', space=sflag, size = 0x8, scoped, tag = 'scoped memory for vlrcnn_forward.1']
    #allocation5 [shape = 'u8[8192]{0}', space=vmem, size = 0x2000, scoped, tag = 'output window, operand 1']
    #allocation6 [shape = 's32[2]{0}', space=sflag, size = 0x8, scoped, tag = 'scoped memory for vlrcnn_forward.1']
    %13 = vsyncpa [#allocation4], 0
    %s14 = scalar_lea.sflag [#allocation4], 1
    %15 = vsyncpa %s14, 0
    %16 = vsyncpa [#allocation6], 0
    %s17 = scalar_lea.sflag [#allocation6], 1
    %18 = vsyncpa %s17, 0
    loop: start=0, step=1, limit=4
    $region2: #{vlrcnn_forward.1} parent=1 // loop_pre_header
      _
    $region3: #{vlrcnn_forward.1} parent=1 // loop_header
      %s20 = sphi 0, %s24
      %p21 = scmp.ge.s32.totalorder %s20, 4
      %s30 = sphi 0, %s32
      %s33 = sphi 0, %s30
      %s34 = sphi 0, %s33
      %s50 = sphi 0, %s34
      %s54 = sphi 0, %s54
      %s56 = sphi 0, %s54
      %s57 = sphi 0, %s56
      %s71 = sphi 0, %s57
      %s77 = sphi 0, %s79
      %s80 = sphi 0, %s77
      %s81 = sphi 0, %s80
      %s97 = sphi 0, %s81
      %s101 = sphi 0, %s101
      %s103 = sphi 0, %s101
      %s104 = sphi 0, %s103
      %s118 = sphi 0, %s104
      %s122 = sphi 0, %s122
      %s124 = sphi 0, %s122
      %s125 = sphi 0, %s124
      %s139 = sphi 0, %s125
      %s143 = sphi 0, %s143
      %s145 = sphi 0, %s143
      %s146 = sphi 0, %s145
      %s160 = sphi 0, %s146
      %s166 = sphi 0, %s168
      %s169 = sphi 0, %s166
      %s170 = sphi 0, %s169
      %s186 = sphi 0, %s170
      %s192 = sphi 0, %s194
      %s195 = sphi 0, %s192
      %s196 = sphi 0, %s195
      %s212 = sphi 0, %s196
    $region4: #{vlrcnn_forward.1} parent=1 // loop_header_branch
      %23 = sbr.rel (%p21) target = $region8
    $region5: #{vlrcnn_forward.1} parent=1 // loop_body
      %s25 = ssub.s32 %s20, 1
      %s26 = ssub.s32 %s20, 2
      %s27 = sadd.s32 %s20, 1
      %s28 = ssub.s32 %s20, %s27
      %p29 = scmp.eq.s32.totalorder %s28, 0
      %s31 = sadd.s32 %s30, 1
      %s32 = scalar_select %p29, %s30, %s31
      %p35 = pneg %p29
      %p36 = scmp.eq.s32.totalorder %s20, 1
      %p37 = por %p35, %p36
      %p38 = scmp.ne.s32.totalorder %s30, %s33
      %p39 = scmp.eq.s32.totalorder %s20, 0
      %p40 = por %p38, %p39
      %p41 = scmp.ne.s32.totalorder %s30, %s33
      %p42 = scmp.eq.s32.totalorder %s25, 1
      %p43 = por %p41, %p42
      %p44 = scmp.ne.s32.totalorder %s33, %s34
      %p45 = scmp.eq.s32.totalorder %s25, 0
      %p46 = por %p44, %p45
      %p47 = scmp.ne.s32.totalorder %s33, %s34
      %p48 = scmp.eq.s32.totalorder %s26, 1
      %p49 = por %p47, %p48
      %p51 = scmp.ne.s32.totalorder %s34, %s50
      %p52 = scmp.eq.s32.totalorder %s26, 0
      %p53 = por %p51, %p52
      %s55 = sadd.s32 %s54, 1
      %p58 = scmp.eq.s32.totalorder %s20, 1
      %p59 = scmp.ne.s32.totalorder %s54, %s56
      %p60 = scmp.eq.s32.totalorder %s20, 0
      %p61 = por %p59, %p60
      %p62 = scmp.ne.s32.totalorder %s54, %s56
      %p63 = scmp.eq.s32.totalorder %s25, 1
      %p64 = por %p62, %p63
      %p65 = scmp.ne.s32.totalorder %s56, %s57
      %p66 = scmp.eq.s32.totalorder %s25, 0
      %p67 = por %p65, %p66
      %p68 = scmp.ne.s32.totalorder %s56, %s57
      %p69 = scmp.eq.s32.totalorder %s26, 1
      %p70 = por %p68, %p69
      %p72 = scmp.ne.s32.totalorder %s57, %s71
      %p73 = scmp.eq.s32.totalorder %s26, 0
      %p74 = por %p72, %p73
      %s75 = ssub.s32 %s20, %s27
      %p76 = scmp.eq.s32.totalorder %s75, 0
      %s78 = sadd.s32 %s77, 1
      %s79 = scalar_select %p76, %s77, %s78
      %p82 = pneg %p76
      %p83 = scmp.eq.s32.totalorder %s20, 1
      %p84 = por %p82, %p83
      %p85 = scmp.ne.s32.totalorder %s77, %s80
      %p86 = scmp.eq.s32.totalorder %s20, 0
      %p87 = por %p85, %p86
      %p88 = scmp.ne.s32.totalorder %s77, %s80
      %p89 = scmp.eq.s32.totalorder %s25, 1
      %p90 = por %p88, %p89
      %p91 = scmp.ne.s32.totalorder %s80, %s81
      %p92 = scmp.eq.s32.totalorder %s25, 0
      %p93 = por %p91, %p92
      %p94 = scmp.ne.s32.totalorder %s80, %s81
      %p95 = scmp.eq.s32.totalorder %s26, 1
      %p96 = por %p94, %p95
      %p98 = scmp.ne.s32.totalorder %s81, %s97
      %p99 = scmp.eq.s32.totalorder %s26, 0
      %p100 = por %p98, %p99
      %s102 = sadd.s32 %s101, 1
      %p105 = scmp.eq.s32.totalorder %s20, 1
      %p106 = scmp.ne.s32.totalorder %s101, %s103
      %p107 = scmp.eq.s32.totalorder %s20, 0
      %p108 = por %p106, %p107
      %p109 = scmp.ne.s32.totalorder %s101, %s103
      %p110 = scmp.eq.s32.totalorder %s25, 1
      %p111 = por %p109, %p110
      %p112 = scmp.ne.s32.totalorder %s103, %s104
      %p113 = scmp.eq.s32.totalorder %s25, 0
      %p114 = por %p112, %p113
      %p115 = scmp.ne.s32.totalorder %s103, %s104
      %p116 = scmp.eq.s32.totalorder %s26, 1
      %p117 = por %p115, %p116
      %p119 = scmp.ne.s32.totalorder %s104, %s118
      %p120 = scmp.eq.s32.totalorder %s26, 0
      %p121 = por %p119, %p120
      %s123 = sadd.s32 %s122, 1
      %p126 = scmp.eq.s32.totalorder %s20, 1
      %p127 = scmp.ne.s32.totalorder %s122, %s124
      %p128 = scmp.eq.s32.totalorder %s20, 0
      %p129 = por %p127, %p128
      %p130 = scmp.ne.s32.totalorder %s122, %s124
      %p131 = scmp.eq.s32.totalorder %s25, 1
      %p132 = por %p130, %p131
      %p133 = scmp.ne.s32.totalorder %s124, %s125
      %p134 = scmp.eq.s32.totalorder %s25, 0
      %p135 = por %p133, %p134
      %p136 = scmp.ne.s32.totalorder %s124, %s125
      %p137 = scmp.eq.s32.totalorder %s26, 1
      %p138 = por %p136, %p137
      %p140 = scmp.ne.s32.totalorder %s125, %s139
      %p141 = scmp.eq.s32.totalorder %s26, 0
      %p142 = por %p140, %p141
      %s144 = sadd.s32 %s143, 1
      %p147 = scmp.eq.s32.totalorder %s20, 1
      %p148 = scmp.ne.s32.totalorder %s143, %s145
      %p149 = scmp.eq.s32.totalorder %s20, 0
      %p150 = por %p148, %p149
      %p151 = scmp.ne.s32.totalorder %s143, %s145
      %p152 = scmp.eq.s32.totalorder %s25, 1
      %p153 = por %p151, %p152
      %p154 = scmp.ne.s32.totalorder %s145, %s146
      %p155 = scmp.eq.s32.totalorder %s25, 0
      %p156 = por %p154, %p155
      %p157 = scmp.ne.s32.totalorder %s145, %s146
      %p158 = scmp.eq.s32.totalorder %s26, 1
      %p159 = por %p157, %p158
      %p161 = scmp.ne.s32.totalorder %s146, %s160
      %p162 = scmp.eq.s32.totalorder %s26, 0
      %p163 = por %p161, %p162
      %s164 = ssub.s32 %s20, %s27
      %p165 = scmp.eq.s32.totalorder %s164, 0
      %s167 = sadd.s32 %s166, 1
      %s168 = scalar_select %p165, %s166, %s167
      %p171 = pneg %p165
      %p172 = scmp.eq.s32.totalorder %s20, 1
      %p173 = por %p171, %p172
      %p174 = scmp.ne.s32.totalorder %s166, %s169
      %p175 = scmp.eq.s32.totalorder %s20, 0
      %p176 = por %p174, %p175
      %p177 = scmp.ne.s32.totalorder %s166, %s169
      %p178 = scmp.eq.s32.totalorder %s25, 1
      %p179 = por %p177, %p178
      %p180 = scmp.ne.s32.totalorder %s169, %s170
      %p181 = scmp.eq.s32.totalorder %s25, 0
      %p182 = por %p180, %p181
      %p183 = scmp.ne.s32.totalorder %s169, %s170
      %p184 = scmp.eq.s32.totalorder %s26, 1
      %p185 = por %p183, %p184
      %p187 = scmp.ne.s32.totalorder %s170, %s186
      %p188 = scmp.eq.s32.totalorder %s26, 0
      %p189 = por %p187, %p188
      %s190 = ssub.s32 %s20, %s27
      %p191 = scmp.eq.s32.totalorder %s190, 0
      %s193 = sadd.s32 %s192, 1
      %s194 = scalar_select %p191, %s192, %s193
      %p197 = pneg %p191
      %p198 = scmp.eq.s32.totalorder %s20, 1
      %p199 = por %p197, %p198
      %p200 = scmp.ne.s32.totalorder %s192, %s195
      %p201 = scmp.eq.s32.totalorder %s20, 0
      %p202 = por %p200, %p201
      %p203 = scmp.ne.s32.totalorder %s192, %s195
      %p204 = scmp.eq.s32.totalorder %s25, 1
      %p205 = por %p203, %p204
      %p206 = scmp.ne.s32.totalorder %s195, %s196
      %p207 = scmp.eq.s32.totalorder %s25, 0
      %p208 = por %p206, %p207
      %p209 = scmp.ne.s32.totalorder %s195, %s196
      %p210 = scmp.eq.s32.totalorder %s26, 1
      %p211 = por %p209, %p210
      %p213 = scmp.ne.s32.totalorder %s196, %s212
      %p214 = scmp.eq.s32.totalorder %s26, 0
      %p215 = por %p213, %p214
      %p216 = scmp.le.s32.totalorder 1, %s20
      %p217 = scmp.lt.s32.totalorder %s20, 3
      %p218 = pnand %p216, %p217
      %p219 = pneg %p218
      // Predicated region
      $region9: #{vlrcnn_forward.1} parent=5 // pred_check
        _
      $region10: #{vlrcnn_forward.1} parent=5 // pred_check_branch
        %221 = sbr.rel (%p218) target = $region12
      $region11: #{vlrcnn_forward.1} parent=5 // pred_region
        %s222 = ssub.s32 %s20, 1
        // Predicated region
        $region13: #{vlrcnn_forward.1} parent=11 // pred_check
          %p223 = pneg %p67
        $region14: #{vlrcnn_forward.1} parent=11 // pred_check_branch
          %225 = sbr.rel (%p223) target = $region16
        $region15: #{vlrcnn_forward.1} parent=11 // pred_region
          _
        $region16: #{vlrcnn_forward.1} parent=11 // pred_fallthru
          _
        // Predicated region
        $region17: #{vlrcnn_forward.1} parent=11 // pred_check
          %p226 = pneg %p114
        $region18: #{vlrcnn_forward.1} parent=11 // pred_check_branch
          %228 = sbr.rel (%p226) target = $region20
        $region19: #{vlrcnn_forward.1} parent=11 // pred_region
          _
        $region20: #{vlrcnn_forward.1} parent=11 // pred_fallthru
          _
        // Predicated region
        $region21: #{vlrcnn_forward.1} parent=11 // pred_check
          %p229 = pneg %p135
        $region22: #{vlrcnn_forward.1} parent=11 // pred_check_branch
          %231 = sbr.rel (%p229) target = $region24
        $region23: #{vlrcnn_forward.1} parent=11 // pred_region
          _
        $region24: #{vlrcnn_forward.1} parent=11 // pred_fallthru
          _
        // Predicated region
        $region25: #{vlrcnn_forward.1} parent=11 // pred_check
          %p232 = pneg %p156
        $region26: #{vlrcnn_forward.1} parent=11 // pred_check_branch
          %234 = sbr.rel (%p232) target = $region28
        $region27: #{vlrcnn_forward.1} parent=11 // pred_region
          _
        $region28: #{vlrcnn_forward.1} parent=11 // pred_fallthru
          _
      $region12: #{vlrcnn_forward.1} parent=5 // pred_fallthru
        _
      %p235 = scmp.lt.s32.totalorder %s20, 2
      // Predicated region
      $region29: #{vlrcnn_forward.1} parent=5 // pred_check
        %p236 = pneg %p235
      $region30: #{vlrcnn_forward.1} parent=5 // pred_check_branch
        %238 = sbr.rel (%p236) target = $region32
      $region31: #{vlrcnn_forward.1} parent=5 // pred_region
        // Predicated region
        $region33: #{vlrcnn_forward.1} parent=31 // pred_check
          %p239 = pneg %p40
        $region34: #{vlrcnn_forward.1} parent=31 // pred_check_branch
          %241 = sbr.rel (%p239) target = $region36
        $region35: #{vlrcnn_forward.1} parent=31 // pred_region
          %p242 = scmp.lt.s32.totalorder %s20, 1
          %s243 = scalar_select %p242, %s20, 1
          %s244 = smul.addr %s243, 10
          %s245 = smul.addr %s244, 8
          %s246 = scalar_lea.vmem %s0, %s245
        $region36: #{vlrcnn_forward.1} parent=31 // pred_fallthru
          _
        // Predicated region
        $region37: #{vlrcnn_forward.1} parent=31 // pred_check
          %p247 = pneg %p87
        $region38: #{vlrcnn_forward.1} parent=31 // pred_check_branch
          %249 = sbr.rel (%p247) target = $region40
        $region39: #{vlrcnn_forward.1} parent=31 // pred_region
          %p250 = scmp.lt.s32.totalorder %s20, 1
          %s251 = scalar_select %p250, %s20, 1
          %s252 = smul.addr %s251, 8
          %s253 = scalar_lea.vmem %s2, %s252
        $region40: #{vlrcnn_forward.1} parent=31 // pred_fallthru
          _
      $region32: #{vlrcnn_forward.1} parent=5 // pred_fallthru
        _
      %p254 = scmp.le.s32.totalorder 1, %s20
      %p255 = scmp.lt.s32.totalorder %s20, 3
      %p256 = pnand %p254, %p255
      %p257 = pneg %p256
      // Predicated region
      $region41: #{vlrcnn_forward.1} parent=5 // pred_check
        _
      $region42: #{vlrcnn_forward.1} parent=5 // pred_check_branch
        %259 = sbr.rel (%p256) target = $region44
      $region43: #{vlrcnn_forward.1} parent=5 // pred_region
        %s260 = ssub.s32 %s20, 1
        %p261 = scmp.lt.s32.totalorder %s25, 1
        %s262 = scalar_select %p261, %s25, 1
        %s263 = smul.addr %s262, 10
        %s264 = smul.addr %s263, 8
        %s265 = scalar_lea.vmem %s0, %s264
        %p266 = pneg %p46
        %p267 = pneg %p43
        %p268 = pneg %p67
        %p269 = pneg %p64
        %p270 = scmp.lt.s32.totalorder %s25, 1
        %s271 = scalar_select %p270, %s25, 1
        %s272 = smul.addr %s271, 8
        %s273 = scalar_lea.vmem %s2, %s272
        %p274 = pneg %p93
        %p275 = pneg %p90
        %p276 = pneg %p114
        %p277 = pneg %p111
        %p278 = pneg %p135
        %p279 = pneg %p132
        %p280 = pneg %p156
        %p281 = pneg %p153
        %p282 = pneg %p182
        %p283 = pneg %p179
        %s284 = sand.u32 %s169, 1
        %s285 = scalar_lea.sflag [#allocation4], %s284
        %s286 = sand.u32 %s169, 1
        %s287 = smul.addr %s286, 16
        %s288 = scalar_lea.vmem [#allocation3], %s287
        %p289 = pneg %p208
        %p290 = pneg %p205
        %s291 = sand.u32 %s195, 1
        %s292 = scalar_lea.sflag [#allocation6], %s291
        %s293 = sand.u32 %s195, 1
        %s294 = smul.addr %s293, 8
        %s295 = scalar_lea.vmem [#allocation5], %s294
        %p296 = scmp.lt.s32.totalorder %s25, 1
        %s297 = scalar_select %p296, %s25, 1
        %s298 = smul.addr %s297, 10
        %s299 = smul.addr %s298, 8
        %s300 = scalar_lea.vmem %s0, %s299
        %p301 = scmp.lt.s32.totalorder %s25, 1
        %s302 = scalar_select %p301, %s25, 1
        %s303 = smul.addr %s302, 8
        %s304 = scalar_lea.vmem %s2, %s303
        %v305 = vld [vmem:[%s1] sm:$0xff]
        %v306 = vld [vmem:[%s1 + $0x8] sm:$0xff]
        %v307 = vld [vmem:[%s1 + $0x10] sm:$0xff]
        %v308 = vld [vmem:[%s1 + $0x18] sm:$0xff]
        %v309 = vld [vmem:[%s300] sm:$0xff]
        %v310 = vld [vmem:[%s300 + $0x8] sm:$0xff]
        %v311 = vld [vmem:[%s300 + $0x10] sm:$0xff]
        %v312 = vld [vmem:[%s300 + $0x18] sm:$0xff]
        %v313 = vld [vmem:[%s300 + $0x20] sm:$0xff]
        %v314 = vld [vmem:[%s300 + $0x28] sm:$0xff]
        %v315 = vld [vmem:[%s300 + $0x30] sm:$0xff]
        %v316 = vld [vmem:[%s300 + $0x38] sm:$0xff]
        %v317 = vld [vmem:[%s300 + $0x40] sm:$0x1f]
        %v318 = vld [vmem:[%s300 + $0x48] sm:$0x1f]
        %vm319 = vcmask 302080
        %v321 = vsel %vm319, %v305, 0
        %v324 = vsel %vm319, %v306, 0
        %v327 = vsel %vm319, %v307, 0
        %v330 = vsel %vm319, %v308, 0
        %vm332 = vcmask 1044480
        %v334 = vsel %vm332, %v317, 0
        %v337 = vsel %vm332, %v318, 0
        %339 = vmatpush.msra.mxu0 0.0
        %340 = vmatpush.msra.mxu0 0.0
        %341 = vmatpush.msra.mxu0 0.0
        %342 = vmatpush.msra.mxu0 0.0
        %343 = vmatpush.msra.mxu0 0.0
        %344 = vmatpush.msra.mxu0 0.0
        %345 = vmatpush.msra.mxu0 0.0
        %346 = vmatpush.msra.mxu0 0.0
        %347 = vmatpush.msra.mxu0 0.0
        %348 = vmatpush.msra.mxu0 0.0
        %349 = vmatpush.msra.mxu0 0.0
        %350 = vmatpush.msra.mxu0 %v334
        %351 = vmatpush.msra.mxu0 %v315
        %352 = vmatpush.msra.mxu0 %v313
        %353 = vmatpush.msra.mxu0 %v311
        %354 = vmatpush.msra.mxu0 %v309
        %355 = vmatmul.f32.gmra.mxu0 %v321
        %v356 = vpop.f32.mrf.mxu0
        %v357 = vadd.f32 0.0, %v356
        %358 = vmatmul.f32.gmra.mxu0 %v324
        %v359 = vpop.f32.mrf.mxu0
        %v360 = vadd.f32 0.0, %v359
        %361 = vmatmul.f32.gmra.mxu0 %v327
        %v362 = vpop.f32.mrf.mxu0
        %v363 = vadd.f32 0.0, %v362
        %364 = vmatmul.f32.gmra.mxu0 %v330
        %v365 = vpop.f32.mrf.mxu0
        %v366 = vadd.f32 0.0, %v365
        %367 = vdwg.mxu0
        %368 = vmatpush.msra.mxu0 0.0
        %369 = vmatpush.msra.mxu0 0.0
        %370 = vmatpush.msra.mxu0 0.0
        %371 = vmatpush.msra.mxu0 0.0
        %372 = vmatpush.msra.mxu0 0.0
        %373 = vmatpush.msra.mxu0 0.0
        %374 = vmatpush.msra.mxu0 0.0
        %375 = vmatpush.msra.mxu0 0.0
        %376 = vmatpush.msra.mxu0 0.0
        %377 = vmatpush.msra.mxu0 0.0
        %378 = vmatpush.msra.mxu0 0.0
        %379 = vmatpush.msra.mxu0 %v337
        %380 = vmatpush.msra.mxu0 %v316
        %381 = vmatpush.msra.mxu0 %v314
        %382 = vmatpush.msra.mxu0 %v312
        %383 = vmatpush.msra.mxu0 %v310
        %384 = vmatmul.f32.gmra.mxu0 %v321
        %v385 = vpop.f32.mrf.mxu0
        %v386 = vadd.f32 0.0, %v385
        %387 = vmatmul.f32.gmra.mxu0 %v324
        %v388 = vpop.f32.mrf.mxu0
        %v389 = vadd.f32 0.0, %v388
        %390 = vmatmul.f32.gmra.mxu0 %v327
        %v391 = vpop.f32.mrf.mxu0
        %v392 = vadd.f32 0.0, %v391
        %393 = vmatmul.f32.gmra.mxu0 %v330
        %v394 = vpop.f32.mrf.mxu0
        %v395 = vadd.f32 0.0, %v394
        %396 = vdwg.mxu0
        %v397 = vmax.f32 %v357, 0.0
        %v398 = vmax.f32 %v386, 0.0
        %v399 = vmax.f32 %v360, 0.0
        %v400 = vmax.f32 %v389, 0.0
        %v401 = vmax.f32 %v363, 0.0
        %v402 = vmax.f32 %v392, 0.0
        %v403 = vmax.f32 %v366, 0.0
        %v404 = vmax.f32 %v395, 0.0
        %v405 = vld [vmem:[%s304] sm:$0xff]
        %v406 = vld [vmem:[%s3] sm:$0xff]
        %v407 = vld [vmem:[%s3 + $0x8] sm:$0xff]
        %v408 = vld [vmem:[%s3 + $0x10] sm:$0xff]
        %v409 = vld [vmem:[%s3 + $0x18] sm:$0xff]
        %v410 = vld [vmem:[%s3 + $0x20] sm:$0x1]
        %vm411 = vcmask 269312
        %v413 = vsel %vm411, %v405, 0
        %vm415 = vcmask 1040384
        %v417 = vsel %vm415, %v410, 0
        %419 = vmatpush.msra.mxu0 0.0
        %420 = vmatpush.msra.mxu0 0.0
        %421 = vmatpush.msra.mxu0 0.0
        %422 = vmatpush.msra.mxu0 0.0
        %423 = vmatpush.msra.mxu0 0.0
        %424 = vmatpush.msra.mxu0 0.0
        %425 = vmatpush.msra.mxu0 0.0
        %426 = vmatpush.msra.mxu0 0.0
        %427 = vmatpush.msra.mxu0 0.0
        %428 = vmatpush.msra.mxu0 0.0
        %429 = vmatpush.msra.mxu0 0.0
        %430 = vmatpush.msra.mxu0 %v417
        %431 = vmatpush.msra.mxu0 %v409
        %432 = vmatpush.msra.mxu0 %v408
        %433 = vmatpush.msra.mxu0 %v407
        %434 = vmatpush.msra.mxu0 %v406
        %435 = vmatmul.f32.gmra.mxu0 %v413
        %v436 = vpop.f32.mrf.mxu0
        %v437 = vadd.f32 0.0, %v436
        %438 = vdwg.mxu0
        %v439 = vmax.f32 %v437, 0.0
        %vm440 = vcmask 261120
        %441 = vst.msk [vmem:[#allocation2] sm:$0xff] %vm440, %v439
        %v442 = vld [vmem:[%s4] sm:$0xf]
        %vm443 = vcmask 257024
        %444 = vst.msk [vmem:[#allocation2 + $0x8] sm:$0xf] %vm443, %v442
        %v445 = vld [vmem:[#allocation2] sm:$0xff]
        %v446 = vld [vmem:[#allocation2 + $0x8] sm:$0xf]
        %v448 = vsel %vm440, %v445, 0
        %v451 = vsel %vm440, %v446, 0
        %453 = vmatpush.msra.mxu0 0.0
        %454 = vmatpush.msra.mxu0 0.0
        %455 = vmatpush.msra.mxu0 0.0
        %456 = vmatpush.msra.mxu0 0.0
        %457 = vmatpush.msra.mxu0 0.0
        %458 = vmatpush.msra.mxu0 0.0
        %459 = vmatpush.msra.mxu0 0.0
        %460 = vmatpush.msra.mxu0 0.0
        %461 = vmatpush.msra.mxu0 0.0
        %462 = vmatpush.msra.mxu0 0.0
        %463 = vmatpush.msra.mxu0 0.0
        %464 = vmatpush.msra.mxu0 0.0
        %465 = vmatpush.msra.mxu0 %v403
        %466 = vmatpush.msra.mxu0 %v401
        %467 = vmatpush.msra.mxu0 %v399
        %468 = vmatpush.msra.mxu0 %v397
        %469 = vmatmul.f32.gmra.mxu0 %v448
        %v470 = vpop.f32.mrf.mxu0
        %v471 = vadd.f32 0.0, %v470
        %472 = vmatmul.f32.gmra.mxu0 %v451
        %v473 = vpop.f32.mrf.mxu0
        %v474 = vadd.f32 0.0, %v473
        %475 = vdwg.mxu0
        %476 = vmatpush.msra.mxu0 0.0
        %477 = vmatpush.msra.mxu0 0.0
        %478 = vmatpush.msra.mxu0 0.0
        %479 = vmatpush.msra.mxu0 0.0
        %480 = vmatpush.msra.mxu0 0.0
        %481 = vmatpush.msra.mxu0 0.0
        %482 = vmatpush.msra.mxu0 0.0
        %483 = vmatpush.msra.mxu0 0.0
        %484 = vmatpush.msra.mxu0 0.0
        %485 = vmatpush.msra.mxu0 0.0
        %486 = vmatpush.msra.mxu0 0.0
        %487 = vmatpush.msra.mxu0 0.0
        %488 = vmatpush.msra.mxu0 %v404
        %489 = vmatpush.msra.mxu0 %v402
        %490 = vmatpush.msra.mxu0 %v400
        %491 = vmatpush.msra.mxu0 %v398
        %492 = vmatmul.f32.gmra.mxu0 %v448
        %v493 = vpop.f32.mrf.mxu0
        %v494 = vadd.f32 0.0, %v493
        %495 = vmatmul.f32.gmra.mxu0 %v451
        %v496 = vpop.f32.mrf.mxu0
        %v497 = vadd.f32 0.0, %v496
        %498 = vdwg.mxu0
        %499 = vst [vmem:[%s288] sm:$0xff] %v471
        %500 = vst [vmem:[%s288 + $0x8] sm:$0xff] %v494
        %v501 = vld [vmem:[%s5] sm:$0xf]
        %503 = vset.pattern.permute.xlu0 0
        %504 = vperm.xlu0 %503, %v501
        %v505 = vpop.permute.xlu0 %504
        %v507 = vadd.f32 %v474, %v505
        %v508 = vadd.f32 %v497, %v505
        %v511 = vrot.slane %v508, 4
        %vm512 = vcmask 1043456
        %v513 = vsel %vm512, %v507, %v511
        %515 = vst [vmem:[%s295] sm:$0xff] %v513
        %s516 = sand.u32 %s169, 1
        %s517 = scalar_lea.sflag [#allocation4], %s516
        %s518 = sand.u32 %s169, 1
        %s519 = smul.addr %s518, 16
        %s520 = scalar_lea.vmem [#allocation3], %s519
        %s521 = sand.u32 %s195, 1
        %s522 = scalar_lea.sflag [#allocation6], %s521
        %s523 = sand.u32 %s195, 1
        %s524 = smul.addr %s523, 8
        %s525 = scalar_lea.vmem [#allocation5], %s524
        // Predicated region
        $region45: #{vlrcnn_forward.1} parent=43 // pred_check
          %p526 = pneg %p179
        $region46: #{vlrcnn_forward.1} parent=43 // pred_check_branch
          %528 = sbr.rel (%p526) target = $region48
        $region47: #{vlrcnn_forward.1} parent=43 // pred_region
          %530 = vsyncadd %s517, 0
          %s531 = smul.addr %s25, 2
          %s532 = smul.addr %s531, 8
          %s533 = scalar_lea.hbm %s6, %s532
          %s535 = sshll.u32 %s520, 4
          %s536 = int_to_ptr.vmem [resolvable:$true] %s535
          %s537 = sshll.u32 %s533, 4
          %s538 = int_to_ptr.hbm [resolvable:$true] %s537
          %540 = dma.vmem_to_hbm [thread:$0]  %s536, 256, %s538, %s517
        $region48: #{vlrcnn_forward.1} parent=43 // pred_fallthru
          _
        // Predicated region
        $region49: #{vlrcnn_forward.1} parent=43 // pred_check
          %p541 = pneg %p205
        $region50: #{vlrcnn_forward.1} parent=43 // pred_check_branch
          %543 = sbr.rel (%p541) target = $region52
        $region51: #{vlrcnn_forward.1} parent=43 // pred_region
          %545 = vsyncadd %s522, 0
          %s546 = smul.addr %s25, 2
          %s547 = smul.addr %s546, 4
          %s548 = scalar_lea.hbm %s7, %s547
          %s550 = sshll.u32 %s525, 4
          %s551 = int_to_ptr.vmem [resolvable:$true] %s550
          %s552 = sshll.u32 %s548, 4
          %s553 = int_to_ptr.hbm [resolvable:$true] %s552
          %555 = dma.vmem_to_hbm [thread:$0]  %s551, 128, %s553, %s522
        $region52: #{vlrcnn_forward.1} parent=43 // pred_fallthru
          _
      $region44: #{vlrcnn_forward.1} parent=5 // pred_fallthru
        _
      %p556 = scmp.le.s32.totalorder 2, %s20
      // Predicated region
      $region53: #{vlrcnn_forward.1} parent=5 // pred_check
        %p557 = pneg %p556
      $region54: #{vlrcnn_forward.1} parent=5 // pred_check_branch
        %559 = sbr.rel (%p557) target = $region56
      $region55: #{vlrcnn_forward.1} parent=5 // pred_region
        %s560 = ssub.s32 %s20, 2
        // Predicated region
        $region57: #{vlrcnn_forward.1} parent=55 // pred_check
          %p561 = pneg %p185
        $region58: #{vlrcnn_forward.1} parent=55 // pred_check_branch
          %563 = sbr.rel (%p561) target = $region60
        $region59: #{vlrcnn_forward.1} parent=55 // pred_region
          %s564 = sand.u32 %s170, 1
          %s565 = scalar_lea.sflag [#allocation4], %s564
          %s566 = sand.u32 %s170, 1
          %s567 = smul.addr %s566, 16
          %s568 = scalar_lea.vmem [#allocation3], %s567
          %570 = dma.done %s565, 256
        $region60: #{vlrcnn_forward.1} parent=55 // pred_fallthru
          _
        // Predicated region
        $region61: #{vlrcnn_forward.1} parent=55 // pred_check
          %p571 = pneg %p211
        $region62: #{vlrcnn_forward.1} parent=55 // pred_check_branch
          %573 = sbr.rel (%p571) target = $region64
        $region63: #{vlrcnn_forward.1} parent=55 // pred_region
          %s574 = sand.u32 %s196, 1
          %s575 = scalar_lea.sflag [#allocation6], %s574
          %s576 = sand.u32 %s196, 1
          %s577 = smul.addr %s576, 8
          %s578 = scalar_lea.vmem [#allocation5], %s577
          %580 = dma.done %s575, 128
        $region64: #{vlrcnn_forward.1} parent=55 // pred_fallthru
          _
      $region56: #{vlrcnn_forward.1} parent=5 // pred_fallthru
        _
    $region6: #{vlrcnn_forward.1} parent=1 // loop_footer
      %s24 = sadd.s32 1, %s20
    $region7: #{vlrcnn_forward.1} parent=1 // loop_footer_branch
      %19 = sbr.rel target = $region3
    $region8: #{vlrcnn_forward.1} parent=1 // loop_exit
      _
    %581 = vsyncpa [#allocation4], 1
    %s582 = scalar_lea.sflag [#allocation4], 1
    %583 = vsyncpa %s582, 1
    %584 = vsyncpa [#allocation6], 1
    %s585 = scalar_lea.sflag [#allocation6], 1
    %586 = vsyncpa %s585, 1

</llo_original>
